<compile_context>
chip_gen: v5e
topology: v5e:2x2
jax: 0.10.0
libtpu: 0.0.40
codegen_flags: <defaults>
</compile_context>

<pallas_src>
import jax
import jax.numpy as jnp
from jax.experimental import pallas as pl
from jax.experimental.pallas import tpu as pltpu

_LANE = 128
_SUBLANE_BF16 = 16          # bf16 packs 2 rows/sublane -> native (16, 128) tile
_COMPUTE_DTYPE = jnp.bfloat16
_STORE_DTYPE = jnp.bfloat16


def _round_up(n, m):
    return ((n + m - 1) // m) * m


def _cdiv(a, b):
    return -(-a // b)


# ---------------------------------------------------------------------------
# Kernels
# ---------------------------------------------------------------------------
def _mlp_kernel_packed(x_ref, w1t_ref, w2t_ref, w3t_ref, out_ref):
    """feat and y packed into a single lane-dense (tb, hid_p) bf16 output.

    w3t's real columns were placed at lanes [hidden, hidden+n_outputs) of the
    padded weight, and h2 is exactly zero on those (padding) lanes, so
    `h2 + y` holds feat in lanes [0, hidden) and y in [hidden, hidden+n_out).
    """
    h = x_ref[...].astype(_COMPUTE_DTYPE)   # no-op if already bf16; free (VPU)
    h1 = jnp.maximum(
        jnp.dot(h, w1t_ref[...], preferred_element_type=jnp.float32), 0.0)
    h2 = jnp.maximum(
        jnp.dot(h1.astype(_COMPUTE_DTYPE), w2t_ref[...],
                preferred_element_type=jnp.float32), 0.0)
    y = jnp.dot(h2.astype(_COMPUTE_DTYPE), w3t_ref[...],
                preferred_element_type=jnp.float32)
    out_ref[...] = (h2 + y).astype(out_ref.dtype)


def _mlp_kernel_split(x_ref, w1t_ref, w2t_ref, w3t_ref, feat_ref, y_ref):
    """Fallback when hidden + n_outputs does not fit in one 128-lane slab."""
    h = x_ref[...].astype(_COMPUTE_DTYPE)
    h1 = jnp.maximum(
        jnp.dot(h, w1t_ref[...], preferred_element_type=jnp.float32), 0.0)
    h2 = jnp.maximum(
        jnp.dot(h1.astype(_COMPUTE_DTYPE), w2t_ref[...],
                preferred_element_type=jnp.float32), 0.0)
    feat_ref[...] = h2.astype(feat_ref.dtype)
    y_ref[...] = jnp.dot(h2.astype(_COMPUTE_DTYPE), w3t_ref[...],
                         preferred_element_type=jnp.float32).astype(y_ref.dtype)


# ---------------------------------------------------------------------------
# Wrapper with one-time weight prep
# ---------------------------------------------------------------------------
class LearnerPallas:
    """Pallas TPU forward for Learner (vars=None, svd=False path).

    w1/w2/w3 are PyTorch-layout (out_features, in_features) weights.  They are
    transposed, zero-padded to lane-dense shapes, and cast to bf16 exactly
    once here; __call__ is jitted so per-call HBM traffic is just x in and the
    packed (y, feat) slab out.
    """

    def __init__(self, w1, w2, w3, *, block_b=2048):
        self.hidden = int(w1.shape[0])
        self.n_inputs = int(w1.shape[1])
        self.n_outputs = int(w3.shape[0])
        assert w2.shape == (self.hidden, self.hidden)
        assert w3.shape == (self.n_outputs, self.hidden)

        self.in_p = _round_up(self.n_inputs, _LANE)
        self.hid_p = _round_up(self.hidden, _LANE)
        self.out_p = _round_up(self.n_outputs, _LANE)
        # Defensive: tiles must be a multiple of 16 rows for bf16.
        self.block_b = _round_up(max(int(block_b), _SUBLANE_BF16), _SUBLANE_BF16)
        # Pack y into feat's zero-pad lanes when it fits -> single output slab.
        self.packed = (self.hidden + self.n_outputs) <= self.hid_p

        cd = _COMPUTE_DTYPE
        self.w1t = jnp.zeros((self.in_p, self.hid_p), cd).at[
            :self.n_inputs, :self.hidden].set(jnp.asarray(w1).T.astype(cd))
        self.w2t = jnp.zeros((self.hid_p, self.hid_p), cd).at[
            :self.hidden, :self.hidden].set(jnp.asarray(w2).T.astype(cd))
        if self.packed:
            self.w3t = jnp.zeros((self.hid_p, self.hid_p), cd).at[
                :self.hidden,
                self.hidden:self.hidden + self.n_outputs].set(
                    jnp.asarray(w3).T.astype(cd))
        else:
            self.w3t = jnp.zeros((self.hid_p, self.out_p), cd).at[
                :self.hidden, :self.n_outputs].set(jnp.asarray(w3).T.astype(cd))

        self._fwd = jax.jit(self._forward)

    def __call__(self, x):
        return self._fwd(x)

    # -- tiling -------------------------------------------------------------
    def _pick_tile(self, B, x_itemsize):
        # Keep the double-buffered x tile within ~6 MiB so the whole pipeline
        # (x + weights + outputs + compiler scratch) stays comfortably under
        # v5e's 16 MiB default scoped VMEM; v6e/v7x (>= 32 MiB scoped) are fine.
        budget = 6 << 20
        cap = (budget // (2 * self.in_p * x_itemsize)) // _SUBLANE_BF16 * _SUBLANE_BF16
        cap = max(_SUBLANE_BF16, min(self.block_b, cap))
        n_tiles = max(1, _cdiv(B, cap))
        if n_tiles == 1 and B >= 64:
            n_tiles = 2          # v7x: give both TensorCores a grid step
        return _round_up(_cdiv(B, n_tiles), _SUBLANE_BF16)

    # -- forward ------------------------------------------------------------
    def _forward(self, x):
        B = x.shape[0]
        h = x.reshape(B, -1)
        assert h.shape[1] == self.n_inputs

        col_pad = self.in_p != self.n_inputs
        x_itemsize = 2 if (col_pad or h.dtype == _COMPUTE_DTYPE) \
            else jnp.dtype(h.dtype).itemsize
        tb = self._pick_tile(B, x_itemsize)
        B_p = _round_up(B, tb)
        grid_b = B_p // tb

        if col_pad or (B_p != B):
            # One padded copy, written in bf16 so the kernel re-reads half the
            # bytes.  Zero rows/cols keep the math exact.
            h_in = jnp.zeros((B_p, self.in_p), _COMPUTE_DTYPE).at[
                :B, :self.n_inputs].set(h.astype(_COMPUTE_DTYPE))
        else:
            # Common case: feed x directly, cast to bf16 inside the kernel
            # (no extra HBM pass over the activations).
            h_in = h

        in_specs = [
            pl.BlockSpec((tb, self.in_p), lambda i: (i, 0)),
            pl.BlockSpec((self.in_p, self.hid_p), lambda i: (0, 0)),   # resident
            pl.BlockSpec((self.hid_p, self.hid_p), lambda i: (0, 0)),  # resident
            pl.BlockSpec(self.w3t.shape, lambda i: (0, 0)),            # resident
        ]

        w3_cols = self.w3t.shape[1]
        flops = 2 * B_p * (self.in_p * self.hid_p
                           + self.hid_p * self.hid_p
                           + self.hid_p * w3_cols)
        x_bytes = B_p * self.in_p * jnp.dtype(h_in.dtype).itemsize
        w_bytes = 2 * (self.w1t.size + self.w2t.size + self.w3t.size)

        if self.packed:
            out_bytes = 2 * B_p * self.hid_p
            packed_out = pl.pallas_call(
                _mlp_kernel_packed,
                out_shape=jax.ShapeDtypeStruct((B_p, self.hid_p), _STORE_DTYPE),
                grid_spec=pltpu.PrefetchScalarGridSpec(
                    num_scalar_prefetch=0,
                    grid=(grid_b,),
                    in_specs=in_specs,
                    out_specs=pl.BlockSpec((tb, self.hid_p), lambda i: (i, 0)),
                ),
                compiler_params=pltpu.CompilerParams(
                    dimension_semantics=("parallel",)),
                cost_estimate=pl.CostEstimate(
                    flops=flops, transcendentals=0,
                    bytes_accessed=x_bytes + w_bytes + out_bytes),
            )(h_in, self.w1t, self.w2t, self.w3t)
            feat = packed_out[:B, :self.hidden].astype(jnp.float32)
            y = packed_out[:B,
                           self.hidden:self.hidden + self.n_outputs
                           ].astype(jnp.float32)
        else:
            out_bytes = 2 * B_p * (self.hid_p + self.out_p)
            feat_p, y_p = pl.pallas_call(
                _mlp_kernel_split,
                out_shape=(
                    jax.ShapeDtypeStruct((B_p, self.hid_p), _STORE_DTYPE),
                    jax.ShapeDtypeStruct((B_p, self.out_p), _STORE_DTYPE),
                ),
                grid_spec=pltpu.PrefetchScalarGridSpec(
                    num_scalar_prefetch=0,
                    grid=(grid_b,),
                    in_specs=in_specs,
                    out_specs=[
                        pl.BlockSpec((tb, self.hid_p), lambda i: (i, 0)),
                        pl.BlockSpec((tb, self.out_p), lambda i: (i, 0)),
                    ],
                ),
                compiler_params=pltpu.CompilerParams(
                    dimension_semantics=("parallel",)),
                cost_estimate=pl.CostEstimate(
                    flops=flops, transcendentals=0,
                    bytes_accessed=x_bytes + w_bytes + out_bytes),
            )(h_in, self.w1t, self.w2t, self.w3t)
            feat = feat_p[:B, :self.hidden].astype(jnp.float32)
            y = y_p[:B, :self.n_outputs].astype(jnp.float32)

        return y, feat


# ---------------------------------------------------------------------------
# Self-test
# ---------------------------------------------------------------------------
def _torch_linear_init(key, out_features, in_features):
    # Deterministic stand-in for nn.Linear default init: U(-1/sqrt(fan_in), +)
    bound = 1.0 / jnp.sqrt(jnp.float32(in_features))
    return jax.random.uniform(
        key, (out_features, in_features), jnp.float32, minval=-bound, maxval=bound
    )


def _reference(x, w1, w2, w3):
    h = x.reshape(x.shape[0], -1)
    h = jnp.maximum(h @ w1.T, 0.0)
    h = jnp.maximum(h @ w2.T, 0.0)
    return h @ w3.T, h


if __name__ == "__main__":
    key = jax.random.PRNGKey(0)
    kx, kx2, k1, k2, k3 = jax.random.split(key, 5)

    # Small shapes consistent with the module: image-like input flattened.
    B, C, H, W = 2, 4, 16, 16
    n_inputs = C * H * W      # 1024
    hidden = 100
    n_outputs = 10

    x = jax.random.normal(kx, (B, C, H, W), jnp.float32)
    w1 = _torch_linear_init(k1, hidden, n_inputs)     # fc1.weight
    w2 = _torch_linear_init(k2, hidden, hidden)       # fc2.weight
    w3 = _torch_linear_init(k3, n_outputs, hidden)    # head.weight

    learner = LearnerPallas(w1, w2, w3)               # weight prep happens once

    # Small batch (padded single-tile path).
    y, feat = learner(x)
    jax.block_until_ready((y, feat))
    assert y.shape == (B, n_outputs) and feat.shape == (B, hidden)

    y_ref, feat_ref = _reference(x, w1, w2, w3)
    # Kernel uses bf16 operands with f32 accumulation and bf16 stores; compare
    # with a tolerance well above the expected ~1e-3 relative bf16 error.
    assert jnp.allclose(y, y_ref, atol=5e-2, rtol=5e-2)
    assert jnp.allclose(feat, feat_ref, atol=5e-2, rtol=5e-2)

    # Larger aligned batch: exercises the zero-copy f32 feed and the >=2 grid
    # step (two-TensorCore) path.
    B2 = 160
    x2 = jax.random.normal(kx2, (B2, C, H, W), jnp.float32)
    y2, feat2 = learner(x2)
    jax.block_until_ready((y2, feat2))
    assert y2.shape == (B2, n_outputs) and feat2.shape == (B2, hidden)
    y2_ref, feat2_ref = _reference(x2, w1, w2, w3)
    assert jnp.allclose(y2, y2_ref, atol=5e-2, rtol=5e-2)
    assert jnp.allclose(feat2, feat2_ref, atol=5e-2, rtol=5e-2)

    print("KERNEL_OK")
</pallas_src>

<mosaic_0001>
module attributes {stable_mosaic.version = 11 : i64} {
  func.func @_mlp_kernel_packed(%arg0: i32, %arg1: memref<16x1024xbf16, #tpu.memory_space<vmem>>, %arg2: memref<1024x128xbf16, #tpu.memory_space<vmem>>, %arg3: memref<128x128xbf16, #tpu.memory_space<vmem>>, %arg4: memref<128x128xbf16, #tpu.memory_space<vmem>>, %arg5: memref<16x128xbf16, #tpu.memory_space<vmem>>) attributes {dimension_semantics = [#tpu.dimension_semantics<parallel>], iteration_bounds = array<i64: 1>, scalar_prefetch = 0 : i64, scratch_operands = 0 : i64, tpu.core_type = #tpu.core_type<tc>, window_params = [{transform_indices = @transform_0, window_bounds = array<i64: 16, 1024>}, {pipeline_mode = #tpu.pipeline_mode<synchronous>, transform_indices = @transform_1, window_bounds = array<i64: 1024, 128>}, {pipeline_mode = #tpu.pipeline_mode<synchronous>, transform_indices = @transform_2, window_bounds = array<i64: 128, 128>}, {pipeline_mode = #tpu.pipeline_mode<synchronous>, transform_indices = @transform_3, window_bounds = array<i64: 128, 128>}, {transform_indices = @transform_4, window_bounds = array<i64: 16, 128>}]} {
    %c0 = arith.constant 0 : index
    %c0_0 = arith.constant 0 : index
    %0 = vector.load %arg1[%c0, %c0_0] : memref<16x1024xbf16, #tpu.memory_space<vmem>>, vector<16x1024xbf16>
    %c0_1 = arith.constant 0 : index
    %c0_2 = arith.constant 0 : index
    %1 = vector.load %arg2[%c0_1, %c0_2] : memref<1024x128xbf16, #tpu.memory_space<vmem>>, vector<1024x128xbf16>
    %cst = arith.constant dense<0.000000e+00> : vector<16x128xf32>
    %2 = tpu.matmul %0, %1, %cst {dimension_numbers = #tpu.dot_dimension_numbers<[1], [0], [0], [1], [0, 0, 1, 1], [], []>} : vector<16x1024xbf16>, vector<1024x128xbf16>, vector<16x128xf32> -> vector<16x128xf32>
    %cst_3 = arith.constant 0.000000e+00 : f32
    %3 = vector.broadcast %cst_3 : f32 to vector<16x128xf32>
    %4 = arith.maximumf %2, %3 : vector<16x128xf32>
    %5 = arith.truncf %4 : vector<16x128xf32> to vector<16x128xbf16>
    %c0_4 = arith.constant 0 : index
    %c0_5 = arith.constant 0 : index
    %6 = vector.load %arg3[%c0_4, %c0_5] : memref<128x128xbf16, #tpu.memory_space<vmem>>, vector<128x128xbf16>
    %cst_6 = arith.constant dense<0.000000e+00> : vector<16x128xf32>
    %7 = tpu.matmul %5, %6, %cst_6 {dimension_numbers = #tpu.dot_dimension_numbers<[1], [0], [0], [1], [0, 0, 1, 1], [], []>} : vector<16x128xbf16>, vector<128x128xbf16>, vector<16x128xf32> -> vector<16x128xf32>
    %cst_7 = arith.constant 0.000000e+00 : f32
    %8 = vector.broadcast %cst_7 : f32 to vector<16x128xf32>
    %9 = arith.maximumf %7, %8 : vector<16x128xf32>
    %10 = arith.truncf %9 : vector<16x128xf32> to vector<16x128xbf16>
    %c0_8 = arith.constant 0 : index
    %c0_9 = arith.constant 0 : index
    %11 = vector.load %arg4[%c0_8, %c0_9] : memref<128x128xbf16, #tpu.memory_space<vmem>>, vector<128x128xbf16>
    %cst_10 = arith.constant dense<0.000000e+00> : vector<16x128xf32>
    %12 = tpu.matmul %10, %11, %cst_10 {dimension_numbers = #tpu.dot_dimension_numbers<[1], [0], [0], [1], [0, 0, 1, 1], [], []>} : vector<16x128xbf16>, vector<128x128xbf16>, vector<16x128xf32> -> vector<16x128xf32>
    %13 = arith.addf %9, %12 : vector<16x128xf32>
    %14 = arith.truncf %13 : vector<16x128xf32> to vector<16x128xbf16>
    %c0_11 = arith.constant 0 : index
    %c0_12 = arith.constant 0 : index
    %15 = vector.load %arg5[%c0_11, %c0_12] : memref<16x128xbf16, #tpu.memory_space<vmem>>, vector<16x128xbf16>
    tpu.vector_store %arg5[%c0_11, %c0_12], %14 {strides = array<i32>} : memref<16x128xbf16, #tpu.memory_space<vmem>>, vector<16x128xbf16>,
    return
  }
  func.func @transform_0(%arg0: i32) -> (i32, i32) {
    %c0_i32 = arith.constant 0 : i32
    %c0_i32_0 = arith.constant 0 : i32
    return %arg0, %c0_i32 : i32, i32
  }
  func.func @transform_1(%arg0: i32) -> (i32, i32) {
    %c0_i32 = arith.constant 0 : i32
    %c0_i32_0 = arith.constant 0 : i32
    %c0_i32_1 = arith.constant 0 : i32
    return %c0_i32, %c0_i32_0 : i32, i32
  }
  func.func @transform_2(%arg0: i32) -> (i32, i32) {
    %c0_i32 = arith.constant 0 : i32
    %c0_i32_0 = arith.constant 0 : i32
    %c0_i32_1 = arith.constant 0 : i32
    return %c0_i32, %c0_i32_0 : i32, i32
  }
  func.func @transform_3(%arg0: i32) -> (i32, i32) {
    %c0_i32 = arith.constant 0 : i32
    %c0_i32_0 = arith.constant 0 : i32
    %c0_i32_1 = arith.constant 0 : i32
    return %c0_i32, %c0_i32_0 : i32, i32
  }
  func.func @transform_4(%arg0: i32) -> (i32, i32) {
    %c0_i32 = arith.constant 0 : i32
    %c0_i32_0 = arith.constant 0 : i32
    return %arg0, %c0_i32 : i32, i32
  }
}

</mosaic_0001>

<llo_original>
// kernel: _forward.1
$region0: #{_forward.1}
  #allocation0 [shape = 'u32[]', space=smem, size = 0x4, offset = 0x4, fixed_abs, tag = 'smem constant byte address 0x4 - core index']
  #allocation1 [shape = 'u32[72,128]{1,0:T(1,128)}', space=vmem, size = 0x9000, scoped, tag = 'internal scratch']
  %s0 = inlined_call_operand.vmem [shape: bf16[16,1024], index: 0, kind: input, shape index: {}]
  %s1 = inlined_call_operand.hbm [shape: bf16[1024,128], index: 1, kind: input, shape index: {}]
  %s2 = inlined_call_operand.vmem [shape: bf16[128,128], index: 2, kind: input, shape index: {}]
  %s3 = inlined_call_operand.vmem [shape: bf16[128,128], index: 3, kind: input, shape index: {}]
  %s4 = inlined_call_operand.vmem [shape: bf16[16,128], index: 4, kind: output, shape index: {}]
  %s5 = sld [smem:[#allocation0]]
  $region30: #{_forward.1} parent=0
    _
  %s7 = ssub.s32 1, %s5
  %s8 = scalar_select 0, %s7, %s5
  $region1: #{_forward.1} parent=0
    #allocation2 [shape = 'u8[262144]{0}', space=vmem, size = 0x40000, scoped, tag = 'input window, operand 1, single buffered']
    #allocation3 [shape = 's32[1]{0}', space=sflag, size = 0x4, scoped, tag = 'scoped memory for _forward.1']
    %9 = vsyncpa [#allocation3], 0
    // Predicated region
    $region2: #{_forward.1} parent=1 // pred_check
      _
    $region3: #{_forward.1} parent=1 // pred_check_branch
      %11 = sbr.rel (0) target = $region5
    $region4: #{_forward.1} parent=1 // pred_region
      _
    $region5: #{_forward.1} parent=1 // pred_fallthru
      _
    // Predicated region
    $region6: #{_forward.1} parent=1 // pred_check
      _
    $region7: #{_forward.1} parent=1 // pred_check_branch
      %13 = sbr.rel (0) target = $region9
    $region8: #{_forward.1} parent=1 // pred_region
      %15 = vsyncadd [#allocation3], 0
      %s16 = sshll.u32 %s1, 4
      %s17 = int_to_ptr.hbm [resolvable:$true] %s16
      %s18 = sshll.u32 [#allocation2], 4
      %s19 = int_to_ptr.vmem [resolvable:$true] %s18
      %24 = dma.hbm_to_vmem [thread:$0]  %s17, 8192, %s19, [#allocation3], 64, 64, 4
    $region9: #{_forward.1} parent=1 // pred_fallthru
      _
    // Predicated region
    $region10: #{_forward.1} parent=1 // pred_check
      _
    $region11: #{_forward.1} parent=1 // pred_check_branch
      %26 = sbr.rel (0) target = $region13
    $region12: #{_forward.1} parent=1 // pred_region
      _
    $region13: #{_forward.1} parent=1 // pred_fallthru
      _
    // Predicated region
    $region14: #{_forward.1} parent=1 // pred_check
      _
    $region15: #{_forward.1} parent=1 // pred_check_branch
      %28 = sbr.rel (0) target = $region17
    $region16: #{_forward.1} parent=1 // pred_region
      _
    $region17: #{_forward.1} parent=1 // pred_fallthru
      _
    // Predicated region
    $region18: #{_forward.1} parent=1 // pred_check
      _
    $region19: #{_forward.1} parent=1 // pred_check_branch
      %30 = sbr.rel (0) target = $region21
    $region20: #{_forward.1} parent=1 // pred_region
      %32 = dma.done [#allocation3], 8192
    $region21: #{_forward.1} parent=1 // pred_fallthru
      _
    %v33 = vld [vmem:[%s0] sm:$0xff]
    %v34 = vld [vmem:[%s0 + $0x8] sm:$0xff]
    %v35 = vld [vmem:[%s0 + $0x10] sm:$0xff]
    %v36 = vld [vmem:[%s0 + $0x18] sm:$0xff]
    %v37 = vld [vmem:[%s0 + $0x20] sm:$0xff]
    %v38 = vld [vmem:[%s0 + $0x28] sm:$0xff]
    %v39 = vld [vmem:[%s0 + $0x30] sm:$0xff]
    %v40 = vld [vmem:[%s0 + $0x38] sm:$0xff]
    %v41 = vld [vmem:[#allocation2] sm:$0xf]
    %v42 = vld [vmem:[#allocation2 + $0x4] sm:$0xf]
    %v43 = vld [vmem:[#allocation2 + $0x8] sm:$0xf]
    %v44 = vld [vmem:[#allocation2 + $0xc] sm:$0xf]
    %v45 = vld [vmem:[#allocation2 + $0x10] sm:$0xf]
    %v46 = vld [vmem:[#allocation2 + $0x14] sm:$0xf]
    %v47 = vld [vmem:[#allocation2 + $0x18] sm:$0xf]
    %v48 = vld [vmem:[#allocation2 + $0x1c] sm:$0xf]
    %v49 = vld [vmem:[#allocation2 + $0x20] sm:$0xf]
    %v50 = vld [vmem:[#allocation2 + $0x24] sm:$0xf]
    %v51 = vld [vmem:[#allocation2 + $0x28] sm:$0xf]
    %v52 = vld [vmem:[#allocation2 + $0x2c] sm:$0xf]
    %v53 = vld [vmem:[#allocation2 + $0x30] sm:$0xf]
    %v54 = vld [vmem:[#allocation2 + $0x34] sm:$0xf]
    %v55 = vld [vmem:[#allocation2 + $0x38] sm:$0xf]
    %v56 = vld [vmem:[#allocation2 + $0x3c] sm:$0xf]
    %v57 = vld [vmem:[#allocation2 + $0x40] sm:$0xf]
    %v58 = vld [vmem:[#allocation2 + $0x44] sm:$0xf]
    %v59 = vld [vmem:[#allocation2 + $0x48] sm:$0xf]
    %v60 = vld [vmem:[#allocation2 + $0x4c] sm:$0xf]
    %v61 = vld [vmem:[#allocation2 + $0x50] sm:$0xf]
    %v62 = vld [vmem:[#allocation2 + $0x54] sm:$0xf]
    %v63 = vld [vmem:[#allocation2 + $0x58] sm:$0xf]
    %v64 = vld [vmem:[#allocation2 + $0x5c] sm:$0xf]
    %v65 = vld [vmem:[#allocation2 + $0x60] sm:$0xf]
    %v66 = vld [vmem:[#allocation2 + $0x64] sm:$0xf]
    %v67 = vld [vmem:[#allocation2 + $0x68] sm:$0xf]
    %v68 = vld [vmem:[#allocation2 + $0x6c] sm:$0xf]
    %v69 = vld [vmem:[#allocation2 + $0x70] sm:$0xf]
    %v70 = vld [vmem:[#allocation2 + $0x74] sm:$0xf]
    %v71 = vld [vmem:[#allocation2 + $0x78] sm:$0xf]
    %v72 = vld [vmem:[#allocation2 + $0x7c] sm:$0xf]
    %v73 = vld [vmem:[#allocation2 + $0x80] sm:$0xf]
    %v74 = vld [vmem:[#allocation2 + $0x84] sm:$0xf]
    %v75 = vld [vmem:[#allocation2 + $0x88] sm:$0xf]
    %v76 = vld [vmem:[#allocation2 + $0x8c] sm:$0xf]
    %v77 = vld [vmem:[#allocation2 + $0x90] sm:$0xf]
    %v78 = vld [vmem:[#allocation2 + $0x94] sm:$0xf]
    %v79 = vld [vmem:[#allocation2 + $0x98] sm:$0xf]
    %v80 = vld [vmem:[#allocation2 + $0x9c] sm:$0xf]
    %v81 = vld [vmem:[#allocation2 + $0xa0] sm:$0xf]
    %v82 = vld [vmem:[#allocation2 + $0xa4] sm:$0xf]
    %v83 = vld [vmem:[#allocation2 + $0xa8] sm:$0xf]
    %v84 = vld [vmem:[#allocation2 + $0xac] sm:$0xf]
    %v85 = vld [vmem:[#allocation2 + $0xb0] sm:$0xf]
    %v86 = vld [vmem:[#allocation2 + $0xb4] sm:$0xf]
    %v87 = vld [vmem:[#allocation2 + $0xb8] sm:$0xf]
    %v88 = vld [vmem:[#allocation2 + $0xbc] sm:$0xf]
    %v89 = vld [vmem:[#allocation2 + $0xc0] sm:$0xf]
    %v90 = vld [vmem:[#allocation2 + $0xc4] sm:$0xf]
    %v91 = vld [vmem:[#allocation2 + $0xc8] sm:$0xf]
    %v92 = vld [vmem:[#allocation2 + $0xcc] sm:$0xf]
    %v93 = vld [vmem:[#allocation2 + $0xd0] sm:$0xf]
    %v94 = vld [vmem:[#allocation2 + $0xd4] sm:$0xf]
    %v95 = vld [vmem:[#allocation2 + $0xd8] sm:$0xf]
    %v96 = vld [vmem:[#allocation2 + $0xdc] sm:$0xf]
    %v97 = vld [vmem:[#allocation2 + $0xe0] sm:$0xf]
    %v98 = vld [vmem:[#allocation2 + $0xe4] sm:$0xf]
    %v99 = vld [vmem:[#allocation2 + $0xe8] sm:$0xf]
    %v100 = vld [vmem:[#allocation2 + $0xec] sm:$0xf]
    %v101 = vld [vmem:[#allocation2 + $0xf0] sm:$0xf]
    %v102 = vld [vmem:[#allocation2 + $0xf4] sm:$0xf]
    %v103 = vld [vmem:[#allocation2 + $0xf8] sm:$0xf]
    %v104 = vld [vmem:[#allocation2 + $0xfc] sm:$0xf]
    %v105 = vld [vmem:[#allocation2 + $0x100] sm:$0xf]
    %v106 = vld [vmem:[#allocation2 + $0x104] sm:$0xf]
    %v107 = vld [vmem:[#allocation2 + $0x108] sm:$0xf]
    %v108 = vld [vmem:[#allocation2 + $0x10c] sm:$0xf]
    %v109 = vld [vmem:[#allocation2 + $0x110] sm:$0xf]
    %v110 = vld [vmem:[#allocation2 + $0x114] sm:$0xf]
    %v111 = vld [vmem:[#allocation2 + $0x118] sm:$0xf]
    %v112 = vld [vmem:[#allocation2 + $0x11c] sm:$0xf]
    %v113 = vld [vmem:[#allocation2 + $0x120] sm:$0xf]
    %v114 = vld [vmem:[#allocation2 + $0x124] sm:$0xf]
    %v115 = vld [vmem:[#allocation2 + $0x128] sm:$0xf]
    %v116 = vld [vmem:[#allocation2 + $0x12c] sm:$0xf]
    %v117 = vld [vmem:[#allocation2 + $0x130] sm:$0xf]
    %v118 = vld [vmem:[#allocation2 + $0x134] sm:$0xf]
    %v119 = vld [vmem:[#allocation2 + $0x138] sm:$0xf]
    %v120 = vld [vmem:[#allocation2 + $0x13c] sm:$0xf]
    %v121 = vld [vmem:[#allocation2 + $0x140] sm:$0xf]
    %v122 = vld [vmem:[#allocation2 + $0x144] sm:$0xf]
    %v123 = vld [vmem:[#allocation2 + $0x148] sm:$0xf]
    %v124 = vld [vmem:[#allocation2 + $0x14c] sm:$0xf]
    %v125 = vld [vmem:[#allocation2 + $0x150] sm:$0xf]
    %v126 = vld [vmem:[#allocation2 + $0x154] sm:$0xf]
    %v127 = vld [vmem:[#allocation2 + $0x158] sm:$0xf]
    %v128 = vld [vmem:[#allocation2 + $0x15c] sm:$0xf]
    %v129 = vld [vmem:[#allocation2 + $0x160] sm:$0xf]
    %v130 = vld [vmem:[#allocation2 + $0x164] sm:$0xf]
    %v131 = vld [vmem:[#allocation2 + $0x168] sm:$0xf]
    %v132 = vld [vmem:[#allocation2 + $0x16c] sm:$0xf]
    %v133 = vld [vmem:[#allocation2 + $0x170] sm:$0xf]
    %v134 = vld [vmem:[#allocation2 + $0x174] sm:$0xf]
    %v135 = vld [vmem:[#allocation2 + $0x178] sm:$0xf]
    %v136 = vld [vmem:[#allocation2 + $0x17c] sm:$0xf]
    %v137 = vld [vmem:[#allocation2 + $0x180] sm:$0xf]
    %v138 = vld [vmem:[#allocation2 + $0x184] sm:$0xf]
    %v139 = vld [vmem:[#allocation2 + $0x188] sm:$0xf]
    %v140 = vld [vmem:[#allocation2 + $0x18c] sm:$0xf]
    %v141 = vld [vmem:[#allocation2 + $0x190] sm:$0xf]
    %v142 = vld [vmem:[#allocation2 + $0x194] sm:$0xf]
    %v143 = vld [vmem:[#allocation2 + $0x198] sm:$0xf]
    %v144 = vld [vmem:[#allocation2 + $0x19c] sm:$0xf]
    %v145 = vld [vmem:[#allocation2 + $0x1a0] sm:$0xf]
    %v146 = vld [vmem:[#allocation2 + $0x1a4] sm:$0xf]
    %v147 = vld [vmem:[#allocation2 + $0x1a8] sm:$0xf]
    %v148 = vld [vmem:[#allocation2 + $0x1ac] sm:$0xf]
    %v149 = vld [vmem:[#allocation2 + $0x1b0] sm:$0xf]
    %v150 = vld [vmem:[#allocation2 + $0x1b4] sm:$0xf]
    %v151 = vld [vmem:[#allocation2 + $0x1b8] sm:$0xf]
    %v152 = vld [vmem:[#allocation2 + $0x1bc] sm:$0xf]
    %v153 = vld [vmem:[#allocation2 + $0x1c0] sm:$0xf]
    %v154 = vld [vmem:[#allocation2 + $0x1c4] sm:$0xf]
    %v155 = vld [vmem:[#allocation2 + $0x1c8] sm:$0xf]
    %v156 = vld [vmem:[#allocation2 + $0x1cc] sm:$0xf]
    %v157 = vld [vmem:[#allocation2 + $0x1d0] sm:$0xf]
    %v158 = vld [vmem:[#allocation2 + $0x1d4] sm:$0xf]
    %v159 = vld [vmem:[#allocation2 + $0x1d8] sm:$0xf]
    %v160 = vld [vmem:[#allocation2 + $0x1dc] sm:$0xf]
    %v161 = vld [vmem:[#allocation2 + $0x1e0] sm:$0xf]
    %v162 = vld [vmem:[#allocation2 + $0x1e4] sm:$0xf]
    %v163 = vld [vmem:[#allocation2 + $0x1e8] sm:$0xf]
    %v164 = vld [vmem:[#allocation2 + $0x1ec] sm:$0xf]
    %v165 = vld [vmem:[#allocation2 + $0x1f0] sm:$0xf]
    %v166 = vld [vmem:[#allocation2 + $0x1f4] sm:$0xf]
    %v167 = vld [vmem:[#allocation2 + $0x1f8] sm:$0xf]
    %v168 = vld [vmem:[#allocation2 + $0x1fc] sm:$0xf]
    %v177 = vunpack.c.l.b16 %v33
    %v178 = vunpack.c.h.b16 %v33
    %v179 = vunpack.c.l.b16 %v34
    %v180 = vunpack.c.h.b16 %v34
    %v181 = vunpack.c.l.b16 %v35
    %v182 = vunpack.c.h.b16 %v35
    %v183 = vunpack.c.l.b16 %v36
    %v184 = vunpack.c.h.b16 %v36
    %v185 = vunpack.c.l.b16 %v37
    %v186 = vunpack.c.h.b16 %v37
    %v187 = vunpack.c.l.b16 %v38
    %v188 = vunpack.c.h.b16 %v38
    %v189 = vunpack.c.l.b16 %v39
    %v190 = vunpack.c.h.b16 %v39
    %v191 = vunpack.c.l.b16 %v40
    %v192 = vunpack.c.h.b16 %v40
    %v193 = vpack.c.b16 %v185, %v177
    %v194 = vpack.c.b16 %v186, %v178
    %v195 = vpack.c.b16 %v187, %v179
    %v196 = vpack.c.b16 %v188, %v180
    %v197 = vpack.c.b16 %v189, %v181
    %v198 = vpack.c.b16 %v190, %v182
    %v199 = vpack.c.b16 %v191, %v183
    %v200 = vpack.c.b16 %v192, %v184
    %v337 = vunpack.c.l.b16 %v41
    %v338 = vunpack.c.l.b16 %v42
    %v339 = vunpack.c.l.b16 %v43
    %v340 = vunpack.c.l.b16 %v44
    %v341 = vunpack.c.l.b16 %v45
    %v342 = vunpack.c.l.b16 %v46
    %v343 = vunpack.c.l.b16 %v47
    %v344 = vunpack.c.l.b16 %v48
    %v345 = vunpack.c.l.b16 %v49
    %v346 = vunpack.c.l.b16 %v50
    %v347 = vunpack.c.l.b16 %v51
    %v348 = vunpack.c.l.b16 %v52
    %v349 = vunpack.c.l.b16 %v53
    %v350 = vunpack.c.l.b16 %v54
    %v351 = vunpack.c.l.b16 %v55
    %v352 = vunpack.c.l.b16 %v56
    %v353 = vunpack.c.l.b16 %v57
    %v354 = vunpack.c.l.b16 %v58
    %v355 = vunpack.c.l.b16 %v59
    %v356 = vunpack.c.l.b16 %v60
    %v357 = vunpack.c.l.b16 %v61
    %v358 = vunpack.c.l.b16 %v62
    %v359 = vunpack.c.l.b16 %v63
    %v360 = vunpack.c.l.b16 %v64
    %v361 = vunpack.c.l.b16 %v65
    %v362 = vunpack.c.l.b16 %v66
    %v363 = vunpack.c.l.b16 %v67
    %v364 = vunpack.c.l.b16 %v68
    %v365 = vunpack.c.l.b16 %v69
    %v366 = vunpack.c.l.b16 %v70
    %v367 = vunpack.c.l.b16 %v71
    %v368 = vunpack.c.l.b16 %v72
    %v369 = vunpack.c.l.b16 %v73
    %v370 = vunpack.c.l.b16 %v74
    %v371 = vunpack.c.l.b16 %v75
    %v372 = vunpack.c.l.b16 %v76
    %v373 = vunpack.c.l.b16 %v77
    %v374 = vunpack.c.l.b16 %v78
    %v375 = vunpack.c.l.b16 %v79
    %v376 = vunpack.c.l.b16 %v80
    %v377 = vunpack.c.l.b16 %v81
    %v378 = vunpack.c.l.b16 %v82
    %v379 = vunpack.c.l.b16 %v83
    %v380 = vunpack.c.l.b16 %v84
    %v381 = vunpack.c.l.b16 %v85
    %v382 = vunpack.c.l.b16 %v86
    %v383 = vunpack.c.l.b16 %v87
    %v384 = vunpack.c.l.b16 %v88
    %v385 = vunpack.c.l.b16 %v89
    %v386 = vunpack.c.l.b16 %v90
    %v387 = vunpack.c.l.b16 %v91
    %v388 = vunpack.c.l.b16 %v92
    %v389 = vunpack.c.l.b16 %v93
    %v390 = vunpack.c.l.b16 %v94
    %v391 = vunpack.c.l.b16 %v95
    %v392 = vunpack.c.l.b16 %v96
    %v393 = vunpack.c.l.b16 %v97
    %v394 = vunpack.c.l.b16 %v98
    %v395 = vunpack.c.l.b16 %v99
    %v396 = vunpack.c.l.b16 %v100
    %v397 = vunpack.c.l.b16 %v101
    %v398 = vunpack.c.l.b16 %v102
    %v399 = vunpack.c.l.b16 %v103
    %v400 = vunpack.c.l.b16 %v104
    %v401 = vunpack.c.l.b16 %v105
    %v402 = vunpack.c.l.b16 %v106
    %v403 = vunpack.c.l.b16 %v107
    %v404 = vunpack.c.l.b16 %v108
    %v405 = vunpack.c.l.b16 %v109
    %v406 = vunpack.c.l.b16 %v110
    %v407 = vunpack.c.l.b16 %v111
    %v408 = vunpack.c.l.b16 %v112
    %v409 = vunpack.c.l.b16 %v113
    %v410 = vunpack.c.l.b16 %v114
    %v411 = vunpack.c.l.b16 %v115
    %v412 = vunpack.c.l.b16 %v116
    %v413 = vunpack.c.l.b16 %v117
    %v414 = vunpack.c.l.b16 %v118
    %v415 = vunpack.c.l.b16 %v119
    %v416 = vunpack.c.l.b16 %v120
    %v417 = vunpack.c.l.b16 %v121
    %v418 = vunpack.c.l.b16 %v122
    %v419 = vunpack.c.l.b16 %v123
    %v420 = vunpack.c.l.b16 %v124
    %v421 = vunpack.c.l.b16 %v125
    %v422 = vunpack.c.l.b16 %v126
    %v423 = vunpack.c.l.b16 %v127
    %v424 = vunpack.c.l.b16 %v128
    %v425 = vunpack.c.l.b16 %v129
    %v426 = vunpack.c.l.b16 %v130
    %v427 = vunpack.c.l.b16 %v131
    %v428 = vunpack.c.l.b16 %v132
    %v429 = vunpack.c.l.b16 %v133
    %v430 = vunpack.c.l.b16 %v134
    %v431 = vunpack.c.l.b16 %v135
    %v432 = vunpack.c.l.b16 %v136
    %v433 = vunpack.c.l.b16 %v137
    %v434 = vunpack.c.l.b16 %v138
    %v435 = vunpack.c.l.b16 %v139
    %v436 = vunpack.c.l.b16 %v140
    %v437 = vunpack.c.l.b16 %v141
    %v438 = vunpack.c.l.b16 %v142
    %v439 = vunpack.c.l.b16 %v143
    %v440 = vunpack.c.l.b16 %v144
    %v441 = vunpack.c.l.b16 %v145
    %v442 = vunpack.c.l.b16 %v146
    %v443 = vunpack.c.l.b16 %v147
    %v444 = vunpack.c.l.b16 %v148
    %v445 = vunpack.c.l.b16 %v149
    %v446 = vunpack.c.l.b16 %v150
    %v447 = vunpack.c.l.b16 %v151
    %v448 = vunpack.c.l.b16 %v152
    %v449 = vunpack.c.l.b16 %v153
    %v450 = vunpack.c.l.b16 %v154
    %v451 = vunpack.c.l.b16 %v155
    %v452 = vunpack.c.l.b16 %v156
    %v453 = vunpack.c.l.b16 %v157
    %v454 = vunpack.c.l.b16 %v158
    %v455 = vunpack.c.l.b16 %v159
    %v456 = vunpack.c.l.b16 %v160
    %v457 = vunpack.c.l.b16 %v161
    %v458 = vunpack.c.l.b16 %v162
    %v459 = vunpack.c.l.b16 %v163
    %v460 = vunpack.c.l.b16 %v164
    %v461 = vunpack.c.l.b16 %v165
    %v462 = vunpack.c.l.b16 %v166
    %v463 = vunpack.c.l.b16 %v167
    %v464 = vunpack.c.l.b16 %v168
    %v465 = vpack.c.b16 %v338, %v337
    %v466 = vpack.c.b16 %v340, %v339
    %v467 = vpack.c.b16 %v342, %v341
    %v468 = vpack.c.b16 %v344, %v343
    %v469 = vpack.c.b16 %v346, %v345
    %v470 = vpack.c.b16 %v348, %v347
    %v471 = vpack.c.b16 %v350, %v349
    %v472 = vpack.c.b16 %v352, %v351
    %v473 = vpack.c.b16 %v354, %v353
    %v474 = vpack.c.b16 %v356, %v355
    %v475 = vpack.c.b16 %v358, %v357
    %v476 = vpack.c.b16 %v360, %v359
    %v477 = vpack.c.b16 %v362, %v361
    %v478 = vpack.c.b16 %v364, %v363
    %v479 = vpack.c.b16 %v366, %v365
    %v480 = vpack.c.b16 %v368, %v367
    %v481 = vpack.c.b16 %v370, %v369
    %v482 = vpack.c.b16 %v372, %v371
    %v483 = vpack.c.b16 %v374, %v373
    %v484 = vpack.c.b16 %v376, %v375
    %v485 = vpack.c.b16 %v378, %v377
    %v486 = vpack.c.b16 %v380, %v379
    %v487 = vpack.c.b16 %v382, %v381
    %v488 = vpack.c.b16 %v384, %v383
    %v489 = vpack.c.b16 %v386, %v385
    %v490 = vpack.c.b16 %v388, %v387
    %v491 = vpack.c.b16 %v390, %v389
    %v492 = vpack.c.b16 %v392, %v391
    %v493 = vpack.c.b16 %v394, %v393
    %v494 = vpack.c.b16 %v396, %v395
    %v495 = vpack.c.b16 %v398, %v397
    %v496 = vpack.c.b16 %v400, %v399
    %v497 = vpack.c.b16 %v402, %v401
    %v498 = vpack.c.b16 %v404, %v403
    %v499 = vpack.c.b16 %v406, %v405
    %v500 = vpack.c.b16 %v408, %v407
    %v501 = vpack.c.b16 %v410, %v409
    %v502 = vpack.c.b16 %v412, %v411
    %v503 = vpack.c.b16 %v414, %v413
    %v504 = vpack.c.b16 %v416, %v415
    %v505 = vpack.c.b16 %v418, %v417
    %v506 = vpack.c.b16 %v420, %v419
    %v507 = vpack.c.b16 %v422, %v421
    %v508 = vpack.c.b16 %v424, %v423
    %v509 = vpack.c.b16 %v426, %v425
    %v510 = vpack.c.b16 %v428, %v427
    %v511 = vpack.c.b16 %v430, %v429
    %v512 = vpack.c.b16 %v432, %v431
    %v513 = vpack.c.b16 %v434, %v433
    %v514 = vpack.c.b16 %v436, %v435
    %v515 = vpack.c.b16 %v438, %v437
    %v516 = vpack.c.b16 %v440, %v439
    %v517 = vpack.c.b16 %v442, %v441
    %v518 = vpack.c.b16 %v444, %v443
    %v519 = vpack.c.b16 %v446, %v445
    %v520 = vpack.c.b16 %v448, %v447
    %v521 = vpack.c.b16 %v450, %v449
    %v522 = vpack.c.b16 %v452, %v451
    %v523 = vpack.c.b16 %v454, %v453
    %v524 = vpack.c.b16 %v456, %v455
    %v525 = vpack.c.b16 %v458, %v457
    %v526 = vpack.c.b16 %v460, %v459
    %v527 = vpack.c.b16 %v462, %v461
    %v528 = vpack.c.b16 %v464, %v463
    %593 = vmatpush.bf16.msra.mxu0 %v472
    %594 = vmatpush.bf16.msra.mxu0 %v471
    %595 = vmatpush.bf16.msra.mxu0 %v470
    %596 = vmatpush.bf16.msra.mxu0 %v469
    %597 = vmatpush.bf16.msra.mxu0 %v468
    %598 = vmatpush.bf16.msra.mxu0 %v467
    %599 = vmatpush.bf16.msra.mxu0 %v466
    %600 = vmatpush.bf16.msra.mxu0 %v465
    %601 = vmatmul.bf16.gmra.mxu0 %v193
    %v602 = vpop.f32.mrf.mxu0
    %v603 = vadd.f32 0.0, %v602
    %v604 = vpop.f32.mrf.mxu0
    %v605 = vadd.f32 0.0, %v604
    %606 = vdwg.mxu0
    %607 = vmatpush.bf16.msra.mxu0 %v480
    %608 = vmatpush.bf16.msra.mxu0 %v479
    %609 = vmatpush.bf16.msra.mxu0 %v478
    %610 = vmatpush.bf16.msra.mxu0 %v477
    %611 = vmatpush.bf16.msra.mxu0 %v476
    %612 = vmatpush.bf16.msra.mxu0 %v475
    %613 = vmatpush.bf16.msra.mxu0 %v474
    %614 = vmatpush.bf16.msra.mxu0 %v473
    %615 = vmatmul.bf16.gmra.mxu0 %v194
    %v616 = vpop.f32.mrf.mxu0
    %v617 = vadd.f32 %v603, %v616
    %v618 = vpop.f32.mrf.mxu0
    %v619 = vadd.f32 %v605, %v618
    %620 = vdwg.mxu0
    %621 = vmatpush.bf16.msra.mxu0 %v488
    %622 = vmatpush.bf16.msra.mxu0 %v487
    %623 = vmatpush.bf16.msra.mxu0 %v486
    %624 = vmatpush.bf16.msra.mxu0 %v485
    %625 = vmatpush.bf16.msra.mxu0 %v484
    %626 = vmatpush.bf16.msra.mxu0 %v483
    %627 = vmatpush.bf16.msra.mxu0 %v482
    %628 = vmatpush.bf16.msra.mxu0 %v481
    %629 = vmatmul.bf16.gmra.mxu0 %v195
    %v630 = vpop.f32.mrf.mxu0
    %v631 = vadd.f32 %v617, %v630
    %v632 = vpop.f32.mrf.mxu0
    %v633 = vadd.f32 %v619, %v632
    %634 = vdwg.mxu0
    %635 = vmatpush.bf16.msra.mxu0 %v496
    %636 = vmatpush.bf16.msra.mxu0 %v495
    %637 = vmatpush.bf16.msra.mxu0 %v494
    %638 = vmatpush.bf16.msra.mxu0 %v493
    %639 = vmatpush.bf16.msra.mxu0 %v492
    %640 = vmatpush.bf16.msra.mxu0 %v491
    %641 = vmatpush.bf16.msra.mxu0 %v490
    %642 = vmatpush.bf16.msra.mxu0 %v489
    %643 = vmatmul.bf16.gmra.mxu0 %v196
    %v644 = vpop.f32.mrf.mxu0
    %v645 = vadd.f32 %v631, %v644
    %v646 = vpop.f32.mrf.mxu0
    %v647 = vadd.f32 %v633, %v646
    %648 = vdwg.mxu0
    %649 = vmatpush.bf16.msra.mxu0 %v504
    %650 = vmatpush.bf16.msra.mxu0 %v503
    %651 = vmatpush.bf16.msra.mxu0 %v502
    %652 = vmatpush.bf16.msra.mxu0 %v501
    %653 = vmatpush.bf16.msra.mxu0 %v500
    %654 = vmatpush.bf16.msra.mxu0 %v499
    %655 = vmatpush.bf16.msra.mxu0 %v498
    %656 = vmatpush.bf16.msra.mxu0 %v497
    %657 = vmatmul.bf16.gmra.mxu0 %v197
    %v658 = vpop.f32.mrf.mxu0
    %v659 = vadd.f32 %v645, %v658
    %v660 = vpop.f32.mrf.mxu0
    %v661 = vadd.f32 %v647, %v660
    %662 = vdwg.mxu0
    %663 = vmatpush.bf16.msra.mxu0 %v512
    %664 = vmatpush.bf16.msra.mxu0 %v511
    %665 = vmatpush.bf16.msra.mxu0 %v510
    %666 = vmatpush.bf16.msra.mxu0 %v509
    %667 = vmatpush.bf16.msra.mxu0 %v508
    %668 = vmatpush.bf16.msra.mxu0 %v507
    %669 = vmatpush.bf16.msra.mxu0 %v506
    %670 = vmatpush.bf16.msra.mxu0 %v505
    %671 = vmatmul.bf16.gmra.mxu0 %v198
    %v672 = vpop.f32.mrf.mxu0
    %v673 = vadd.f32 %v659, %v672
    %v674 = vpop.f32.mrf.mxu0
    %v675 = vadd.f32 %v661, %v674
    %676 = vdwg.mxu0
    %677 = vmatpush.bf16.msra.mxu0 %v520
    %678 = vmatpush.bf16.msra.mxu0 %v519
    %679 = vmatpush.bf16.msra.mxu0 %v518
    %680 = vmatpush.bf16.msra.mxu0 %v517
    %681 = vmatpush.bf16.msra.mxu0 %v516
    %682 = vmatpush.bf16.msra.mxu0 %v515
    %683 = vmatpush.bf16.msra.mxu0 %v514
    %684 = vmatpush.bf16.msra.mxu0 %v513
    %685 = vmatmul.bf16.gmra.mxu0 %v199
    %v686 = vpop.f32.mrf.mxu0
    %v687 = vadd.f32 %v673, %v686
    %v688 = vpop.f32.mrf.mxu0
    %v689 = vadd.f32 %v675, %v688
    %690 = vdwg.mxu0
    %691 = vmatpush.bf16.msra.mxu0 %v528
    %692 = vmatpush.bf16.msra.mxu0 %v527
    %693 = vmatpush.bf16.msra.mxu0 %v526
    %694 = vmatpush.bf16.msra.mxu0 %v525
    %695 = vmatpush.bf16.msra.mxu0 %v524
    %696 = vmatpush.bf16.msra.mxu0 %v523
    %697 = vmatpush.bf16.msra.mxu0 %v522
    %698 = vmatpush.bf16.msra.mxu0 %v521
    %699 = vmatmul.bf16.gmra.mxu0 %v200
    %v700 = vpop.f32.mrf.mxu0
    %v701 = vadd.f32 %v687, %v700
    %v702 = vpop.f32.mrf.mxu0
    %v703 = vadd.f32 %v689, %v702
    %704 = vdwg.mxu0
    %v705 = vmax.f32 %v701, 0.0
    %v706 = vmax.f32 %v703, 0.0
    %v707 = vpack.c.bf16 %v706, %v705
    %v708 = vld [vmem:[%s2] sm:$0xf]
    %v709 = vld [vmem:[%s2 + $0x4] sm:$0xf]
    %v710 = vld [vmem:[%s2 + $0x8] sm:$0xf]
    %v711 = vld [vmem:[%s2 + $0xc] sm:$0xf]
    %v712 = vld [vmem:[%s2 + $0x10] sm:$0xf]
    %v713 = vld [vmem:[%s2 + $0x14] sm:$0xf]
    %v714 = vld [vmem:[%s2 + $0x18] sm:$0xf]
    %v715 = vld [vmem:[%s2 + $0x1c] sm:$0xf]
    %v716 = vld [vmem:[%s2 + $0x20] sm:$0xf]
    %v717 = vld [vmem:[%s2 + $0x24] sm:$0xf]
    %v718 = vld [vmem:[%s2 + $0x28] sm:$0xf]
    %v719 = vld [vmem:[%s2 + $0x2c] sm:$0xf]
    %v720 = vld [vmem:[%s2 + $0x30] sm:$0xf]
    %v721 = vld [vmem:[%s2 + $0x34] sm:$0xf]
    %v722 = vld [vmem:[%s2 + $0x38] sm:$0xf]
    %v723 = vld [vmem:[%s2 + $0x3c] sm:$0xf]
    %v740 = vunpack.c.l.b16 %v708
    %v741 = vunpack.c.l.b16 %v709
    %v742 = vunpack.c.l.b16 %v710
    %v743 = vunpack.c.l.b16 %v711
    %v744 = vunpack.c.l.b16 %v712
    %v745 = vunpack.c.l.b16 %v713
    %v746 = vunpack.c.l.b16 %v714
    %v747 = vunpack.c.l.b16 %v715
    %v748 = vunpack.c.l.b16 %v716
    %v749 = vunpack.c.l.b16 %v717
    %v750 = vunpack.c.l.b16 %v718
    %v751 = vunpack.c.l.b16 %v719
    %v752 = vunpack.c.l.b16 %v720
    %v753 = vunpack.c.l.b16 %v721
    %v754 = vunpack.c.l.b16 %v722
    %v755 = vunpack.c.l.b16 %v723
    %v756 = vpack.c.b16 %v741, %v740
    %v757 = vpack.c.b16 %v743, %v742
    %v758 = vpack.c.b16 %v745, %v744
    %v759 = vpack.c.b16 %v747, %v746
    %v760 = vpack.c.b16 %v749, %v748
    %v761 = vpack.c.b16 %v751, %v750
    %v762 = vpack.c.b16 %v753, %v752
    %v763 = vpack.c.b16 %v755, %v754
    %772 = vmatpush.bf16.msra.mxu0 %v763
    %773 = vmatpush.bf16.msra.mxu0 %v762
    %774 = vmatpush.bf16.msra.mxu0 %v761
    %775 = vmatpush.bf16.msra.mxu0 %v760
    %776 = vmatpush.bf16.msra.mxu0 %v759
    %777 = vmatpush.bf16.msra.mxu0 %v758
    %778 = vmatpush.bf16.msra.mxu0 %v757
    %779 = vmatpush.bf16.msra.mxu0 %v756
    %780 = vmatmul.bf16.gmra.mxu0 %v707
    %v781 = vpop.f32.mrf.mxu0
    %v782 = vadd.f32 0.0, %v781
    %v783 = vpop.f32.mrf.mxu0
    %v784 = vadd.f32 0.0, %v783
    %785 = vdwg.mxu0
    %v786 = vmax.f32 %v782, 0.0
    %v787 = vmax.f32 %v784, 0.0
    %v788 = vpack.c.bf16 %v787, %v786
    %v789 = vld [vmem:[%s3] sm:$0xf]
    %v790 = vld [vmem:[%s3 + $0x4] sm:$0xf]
    %v791 = vld [vmem:[%s3 + $0x8] sm:$0xf]
    %v792 = vld [vmem:[%s3 + $0xc] sm:$0xf]
    %v793 = vld [vmem:[%s3 + $0x10] sm:$0xf]
    %v794 = vld [vmem:[%s3 + $0x14] sm:$0xf]
    %v795 = vld [vmem:[%s3 + $0x18] sm:$0xf]
    %v796 = vld [vmem:[%s3 + $0x1c] sm:$0xf]
    %v797 = vld [vmem:[%s3 + $0x20] sm:$0xf]
    %v798 = vld [vmem:[%s3 + $0x24] sm:$0xf]
    %v799 = vld [vmem:[%s3 + $0x28] sm:$0xf]
    %v800 = vld [vmem:[%s3 + $0x2c] sm:$0xf]
    %v801 = vld [vmem:[%s3 + $0x30] sm:$0xf]
    %v802 = vld [vmem:[%s3 + $0x34] sm:$0xf]
    %v803 = vld [vmem:[%s3 + $0x38] sm:$0xf]
    %v804 = vld [vmem:[%s3 + $0x3c] sm:$0xf]
    %v821 = vunpack.c.l.b16 %v789
    %v822 = vunpack.c.l.b16 %v790
    %v823 = vunpack.c.l.b16 %v791
    %v824 = vunpack.c.l.b16 %v792
    %v825 = vunpack.c.l.b16 %v793
    %v826 = vunpack.c.l.b16 %v794
    %v827 = vunpack.c.l.b16 %v795
    %v828 = vunpack.c.l.b16 %v796
    %v829 = vunpack.c.l.b16 %v797
    %v830 = vunpack.c.l.b16 %v798
    %v831 = vunpack.c.l.b16 %v799
    %v832 = vunpack.c.l.b16 %v800
    %v833 = vunpack.c.l.b16 %v801
    %v834 = vunpack.c.l.b16 %v802
    %v835 = vunpack.c.l.b16 %v803
    %v836 = vunpack.c.l.b16 %v804
    %v837 = vpack.c.b16 %v822, %v821
    %v838 = vpack.c.b16 %v824, %v823
    %v839 = vpack.c.b16 %v826, %v825
    %v840 = vpack.c.b16 %v828, %v827
    %v841 = vpack.c.b16 %v830, %v829
    %v842 = vpack.c.b16 %v832, %v831
    %v843 = vpack.c.b16 %v834, %v833
    %v844 = vpack.c.b16 %v836, %v835
    %853 = vmatpush.bf16.msra.mxu0 %v844
    %854 = vmatpush.bf16.msra.mxu0 %v843
    %855 = vmatpush.bf16.msra.mxu0 %v842
    %856 = vmatpush.bf16.msra.mxu0 %v841
    %857 = vmatpush.bf16.msra.mxu0 %v840
    %858 = vmatpush.bf16.msra.mxu0 %v839
    %859 = vmatpush.bf16.msra.mxu0 %v838
    %860 = vmatpush.bf16.msra.mxu0 %v837
    %861 = vmatmul.bf16.gmra.mxu0 %v788
    %v862 = vpop.f32.mrf.mxu0
    %v863 = vadd.f32 0.0, %v862
    %v864 = vpop.f32.mrf.mxu0
    %v865 = vadd.f32 0.0, %v864
    %866 = vdwg.mxu0
    %v867 = vadd.f32 %v786, %v863
    %v868 = vadd.f32 %v787, %v865
    %v869 = vpack.c.bf16 %v867, %v867
    %v870 = vpack.c.bf16 %v868, %v868
    %871 = vst [vmem:[%s4] sm:$0xf] %v869
    %872 = vst [vmem:[%s4 + $0x4] sm:$0xf] %v870
    // Predicated region
    $region22: #{_forward.1} parent=1 // pred_check
      _
    $region23: #{_forward.1} parent=1 // pred_check_branch
      %874 = sbr.rel (0) target = $region25
    $region24: #{_forward.1} parent=1 // pred_region
      _
    $region25: #{_forward.1} parent=1 // pred_fallthru
      _
    // Predicated region
    $region26: #{_forward.1} parent=1 // pred_check
      _
    $region27: #{_forward.1} parent=1 // pred_check_branch
      %876 = sbr.rel (0) target = $region29
    $region28: #{_forward.1} parent=1 // pred_region
      _
    $region29: #{_forward.1} parent=1 // pred_fallthru
      _
    %877 = vsyncpa [#allocation3], 1

</llo_original>
